<compile_context>
chip_gen: v7x
topology: tpu7x:2x2x1
jax: 0.10.0
libtpu: 0.0.40
codegen_flags: <defaults>
</compile_context>

<pallas_src>
import jax
import jax.numpy as jnp
import numpy as np
from jax.experimental import pallas as pl
from jax.experimental.pallas import tpu as pltpu

BN_EPS = 1e-5
LANE = 128   # lane-dense pad width for all feature axes


def _rup(n, m):
    return ((n + m - 1) // m) * m


def _pad2d(a, rows, cols):
    r, c = a.shape
    return jnp.pad(a, ((0, rows - r), (0, cols - c)))


# -----------------------------------------------------------------------------
# Fused Pallas kernel (entire GIN forward in one pallas_call)
# -----------------------------------------------------------------------------

def make_fused_gin_kernel(num_gin_layers, num_mlp_layers, D, compute_dtype):
    """Ref signature:
         eps1 (SMEM, [L])  -- host-precomputed (1 + eps)
         adj       [N_pad, N_pad]   (compute_dtype)
         gp        [G_pad, N_pad]   (compute_dtype)
         x         [N_pad, D]       (compute_dtype)
         wmlp_slab [L*M*D, D]       (compute_dtype)  BN-folded MLP weights
         bmlp_slab [L*M,  D]        (f32)            BN-folded MLP biases
         wpred     [(L+1)*D, D]     (compute_dtype)  stacked prediction weights
         bpred     [1, D]           (f32)            host-summed prediction bias
         out       [G_pad, D]       (f32)
    """
    L, M = num_gin_layers, num_mlp_layers

    def kernel(eps1_ref, adj_ref, gp_ref, x_ref, wmlp_ref, bmlp_ref,
               wpred_ref, bpred_ref, out_ref):
        adj = adj_ref[...]
        gp = gp_ref[...]
        h_c = x_ref[...]                                    # compute-dtype operand

        # pooled representation of the input layer (readout term 0)
        pooled = [jnp.dot(gp, h_c, preferred_element_type=jnp.float32)]

        for layer in range(L):
            # GIN sum-aggregation with learn_eps: Adj @ h + (1 + eps) * h
            # (element-wise work stays in f32; only matmul operands are narrow)
            z = (jnp.dot(adj, h_c, preferred_element_type=jnp.float32)
                 + eps1_ref[layer] * h_c.astype(jnp.float32))
            # MLP with BN folded into each Linear: repeated relu(z @ W' + b')
            for m in range(M):
                idx = layer * M + m
                w = wmlp_ref[pl.ds(idx * D, D), :]          # static view, no copy
                b = bmlp_ref[pl.ds(idx, 1), :]
                z = jnp.maximum(
                    jnp.dot(z.astype(compute_dtype), w,
                            preferred_element_type=jnp.float32) + b, 0.0)
            h_c = z.astype(compute_dtype)
            pooled.append(jnp.dot(gp, h_c, preferred_element_type=jnp.float32))

        # Fused readout: one [G_pad, (L+1)*D] @ [(L+1)*D, D] matmul + one bias.
        pooled_cat = jnp.concatenate(pooled, axis=-1)
        score = (jnp.dot(pooled_cat.astype(compute_dtype), wpred_ref[...],
                         preferred_element_type=jnp.float32)
                 + bpred_ref[...])
        out_ref[...] = score

    return kernel


# -----------------------------------------------------------------------------
# Host-side BN folding (exact in eval mode), parameter packing, fused wrapper
# -----------------------------------------------------------------------------

def fold_bn_into_linear(W, b, bn):
    gamma, beta, mean, var = bn
    scale = gamma * jax.lax.rsqrt(var + BN_EPS)              # [1, dout]
    Wf = W * scale                                           # broadcast over rows
    bf = (b - mean) * scale + beta
    return Wf, bf


def gin_forward_pallas(params, x, adj, graph_pool, compute_dtype=jnp.bfloat16):
    """Eval-mode forward (dropout = identity, BatchNorm uses running stats)."""
    L = len(params["mlps"])                    # num GIN layers (= num_layers - 1)
    M = len(params["mlps"][0]["linears"])      # num MLP layers
    assert params["eps"].shape[0] == L, "len(eps) must equal num GIN layers"
    assert M >= 1, "MLP must have at least one linear layer"

    N, input_dim = x.shape
    G = graph_pool.shape[0]
    output_dim = params["pred"][0][0].shape[1]
    hidden_dim = params["mlps"][0]["linears"][-1][0].shape[1]
    D = LANE
    assert max(input_dim, hidden_dim, output_dim) <= D

    N_pad = _rup(N, 8)
    G_pad = _rup(G, 8)

    # ---- lane-dense padded activations / structure matrices ----------------
    x_p = _pad2d(x, N_pad, D).astype(compute_dtype)
    adj_p = _pad2d(adj, N_pad, N_pad).astype(compute_dtype)       # 0/1 -> exact
    gp_p = _pad2d(graph_pool, G_pad, N_pad).astype(compute_dtype)  # 0/1 -> exact

    # ---- fold BN into Linears, pack MLP params into two slabs ---------------
    w_rows, b_rows = [], []
    for layer in range(L):
        mlp = params["mlps"][layer]
        for i in range(M):
            W, b = mlp["linears"][i]
            bn = mlp["bns"][i] if i < M - 1 else params["outer_bns"][layer]
            Wf, bf = fold_bn_into_linear(W, b, bn)
            w_rows.append(_pad2d(Wf, D, D))
            b_rows.append(_pad2d(bf, 1, D))
    wmlp_slab = jnp.concatenate(w_rows, axis=0).astype(compute_dtype)  # [L*M*D, D]
    bmlp_slab = jnp.concatenate(b_rows, axis=0)                        # [L*M, D] f32

    # ---- stack prediction heads into one weight slab + one summed bias ------
    wp_rows = []
    bpred = jnp.zeros((1, D), jnp.float32)
    for l in range(L + 1):
        Wp, bp = params["pred"][l]
        wp_rows.append(_pad2d(Wp, D, D))
        bpred = bpred + _pad2d(bp, 1, D)
    wpred_slab = jnp.concatenate(wp_rows, axis=0).astype(compute_dtype)  # [(L+1)*D, D]

    eps1 = (1.0 + params["eps"]).astype(jnp.float32)                     # SMEM [L]

    flat_inputs = [eps1, adj_p, gp_p, x_p, wmlp_slab, bmlp_slab, wpred_slab, bpred]

    # ---- cost estimate (advisory) -------------------------------------------
    flops = 2 * (L * N_pad * N_pad * D            # Adj @ h
                 + L * M * N_pad * D * D          # MLP matmuls
                 + (L + 1) * G_pad * N_pad * D    # graph pooling
                 + G_pad * (L + 1) * D * D)       # fused readout
    bytes_accessed = (sum(int(a.size) * a.dtype.itemsize for a in flat_inputs)
                      + G_pad * D * 4)

    kernel = make_fused_gin_kernel(L, M, D, compute_dtype)
    in_specs = ([pl.BlockSpec(memory_space=pltpu.MemorySpace.SMEM)]
                + [pl.BlockSpec(memory_space=pltpu.MemorySpace.VMEM)]
                * (len(flat_inputs) - 1))

    out_pad = pl.pallas_call(
        kernel,
        out_shape=jax.ShapeDtypeStruct((G_pad, D), jnp.float32),
        in_specs=in_specs,
        out_specs=pl.BlockSpec(memory_space=pltpu.MemorySpace.VMEM),
        cost_estimate=pl.CostEstimate(flops=flops, transcendentals=0,
                                      bytes_accessed=bytes_accessed),
    )(*flat_inputs)

    return out_pad[:G, :output_dim]


# -----------------------------------------------------------------------------
# Parameter initialization (deterministic, PyTorch-like shapes)
# -----------------------------------------------------------------------------

def init_linear(key, din, dout):
    kw, kb = jax.random.split(key)
    bound = 1.0 / np.sqrt(din)
    W = jax.random.uniform(kw, (din, dout), jnp.float32, -bound, bound)
    b = jax.random.uniform(kb, (1, dout), jnp.float32, -bound, bound)
    return W, b


def init_bn(key, dim):
    km, kv = jax.random.split(key)
    gamma = jnp.ones((1, dim), jnp.float32)
    beta = jnp.zeros((1, dim), jnp.float32)
    running_mean = 0.1 * jax.random.normal(km, (1, dim), jnp.float32)
    running_var = 1.0 + 0.1 * jax.random.uniform(kv, (1, dim), jnp.float32)
    return gamma, beta, running_mean, running_var


def init_gin_params(key, num_layers, num_mlp_layers, input_dim, hidden_dim, output_dim):
    params = {"eps": jnp.zeros((num_layers - 1,), jnp.float32),
              "mlps": [], "outer_bns": [], "pred": []}
    for layer in range(num_layers - 1):
        din = input_dim if layer == 0 else hidden_dim
        linears, bns = [], []
        if num_mlp_layers == 1:
            key, k = jax.random.split(key)
            linears.append(init_linear(k, din, hidden_dim))
        else:
            key, k = jax.random.split(key)
            linears.append(init_linear(k, din, hidden_dim))
            for _ in range(num_mlp_layers - 2):
                key, k = jax.random.split(key)
                linears.append(init_linear(k, hidden_dim, hidden_dim))
            key, k = jax.random.split(key)
            linears.append(init_linear(k, hidden_dim, hidden_dim))
            for _ in range(num_mlp_layers - 1):
                key, k = jax.random.split(key)
                bns.append(init_bn(k, hidden_dim))
        params["mlps"].append({"linears": linears, "bns": bns})
        key, k = jax.random.split(key)
        params["outer_bns"].append(init_bn(k, hidden_dim))
    for layer in range(num_layers):
        din = input_dim if layer == 0 else hidden_dim
        key, k = jax.random.split(key)
        params["pred"].append(init_linear(k, din, output_dim))
    return params


# -----------------------------------------------------------------------------
# Pure-JAX reference (un-folded BN, for numerical validation)
# -----------------------------------------------------------------------------

def gin_forward_ref(params, x, adj, graph_pool):
    def bn_relu(y, bn):
        g, be, m, v = bn
        return jnp.maximum((y - m) * jax.lax.rsqrt(v + BN_EPS) * g + be, 0.0)

    hidden_rep = [x]
    h = x
    for layer in range(len(params["mlps"])):
        pooled = adj @ h + (1.0 + params["eps"][layer]) * h
        mlp = params["mlps"][layer]
        z = pooled
        for i in range(len(mlp["linears"]) - 1):
            W, b = mlp["linears"][i]
            z = bn_relu(z @ W + b, mlp["bns"][i])
        W, b = mlp["linears"][-1]
        h = bn_relu(z @ W + b, params["outer_bns"][layer])
        hidden_rep.append(h)
    score = 0.0
    for layer, h in enumerate(hidden_rep):
        Wp, bp = params["pred"][layer]
        score = score + (graph_pool @ h) @ Wp + bp
    return score


# -----------------------------------------------------------------------------
# Main
# -----------------------------------------------------------------------------

if __name__ == "__main__":
    num_layers = 3
    num_mlp_layers = 2
    input_dim = 16
    hidden_dim = 32
    output_dim = 8
    nodes_per_graph = 8
    num_graphs = 2
    N = num_graphs * nodes_per_graph

    key = jax.random.PRNGKey(0)
    k_feat, k_adj, k_params = jax.random.split(key, 3)

    # node features (concatenated over the batch of graphs): [N, input_dim]
    x = jax.random.normal(k_feat, (N, input_dim), jnp.float32)

    # block-diagonal dense adjacency (symmetric, no self-loops since learn_eps=True)
    adj = np.zeros((N, N), np.float32)
    adj_keys = jax.random.split(k_adj, num_graphs)
    for g in range(num_graphs):
        a = np.asarray(
            jax.random.bernoulli(adj_keys[g], 0.4,
                                 (nodes_per_graph, nodes_per_graph)), np.float32)
        a = np.maximum(a, a.T)
        np.fill_diagonal(a, 0.0)
        s = g * nodes_per_graph
        adj[s:s + nodes_per_graph, s:s + nodes_per_graph] = a
    adj = jnp.asarray(adj)

    # graph pooling matrix [num_graphs, N]; 'sum' pooling -> ones over each graph's nodes
    gp = np.zeros((num_graphs, N), np.float32)
    for g in range(num_graphs):
        gp[g, g * nodes_per_graph:(g + 1) * nodes_per_graph] = 1.0
    graph_pool = jnp.asarray(gp)

    params = init_gin_params(k_params, num_layers, num_mlp_layers,
                             input_dim, hidden_dim, output_dim)

    ref = gin_forward_ref(params, x, adj, graph_pool)

    # f32-operand path: tight check against the un-folded f32 reference.
    out_f32 = gin_forward_pallas(params, x, adj, graph_pool,
                                 compute_dtype=jnp.float32)
    out_f32 = jax.block_until_ready(out_f32)
    np.testing.assert_allclose(np.asarray(out_f32), np.asarray(ref),
                               rtol=1e-4, atol=1e-4)

    # bf16-operand path (MXU fast path on v6e/v7x): looser tolerance.
    out_bf16 = gin_forward_pallas(params, x, adj, graph_pool,
                                  compute_dtype=jnp.bfloat16)
    out_bf16 = jax.block_until_ready(out_bf16)
    np.testing.assert_allclose(np.asarray(out_bf16), np.asarray(ref),
                               rtol=5e-2, atol=5e-2)

    print("KERNEL_OK")
</pallas_src>

<mosaic_0001>
module attributes {stable_mosaic.version = 11 : i64} {
  func.func @kernel(%arg0: memref<2xf32, #tpu.memory_space<smem>>, %arg1: memref<16x16xf32, #tpu.memory_space<vmem>>, %arg2: memref<8x16xf32, #tpu.memory_space<vmem>>, %arg3: memref<16x128xf32, #tpu.memory_space<vmem>>, %arg4: memref<512x128xf32, #tpu.memory_space<vmem>>, %arg5: memref<4x128xf32, #tpu.memory_space<vmem>>, %arg6: memref<384x128xf32, #tpu.memory_space<vmem>>, %arg7: memref<1x128xf32, #tpu.memory_space<vmem>>, %arg8: memref<8x128xf32, #tpu.memory_space<vmem>>) attributes {dimension_semantics = [], scalar_prefetch = 0 : i64, scratch_operands = 0 : i64, tpu.core_type = #tpu.core_type<tc>} {
    %c0 = arith.constant 0 : index
    %c0_0 = arith.constant 0 : index
    %0 = vector.load %arg1[%c0, %c0_0] : memref<16x16xf32, #tpu.memory_space<vmem>>, vector<16x16xf32>
    %c0_1 = arith.constant 0 : index
    %c0_2 = arith.constant 0 : index
    %1 = vector.load %arg2[%c0_1, %c0_2] : memref<8x16xf32, #tpu.memory_space<vmem>>, vector<8x16xf32>
    %c0_3 = arith.constant 0 : index
    %c0_4 = arith.constant 0 : index
    %2 = vector.load %arg3[%c0_3, %c0_4] : memref<16x128xf32, #tpu.memory_space<vmem>>, vector<16x128xf32>
    %cst = arith.constant dense<0.000000e+00> : vector<8x128xf32>
    %3 = tpu.matmul %1, %2, %cst {dimension_numbers = #tpu.dot_dimension_numbers<[1], [0], [0], [1], [0, 0, 1, 1], [], []>} : vector<8x16xf32>, vector<16x128xf32>, vector<8x128xf32> -> vector<8x128xf32>
    %cst_5 = arith.constant dense<0.000000e+00> : vector<16x128xf32>
    %4 = tpu.matmul %0, %2, %cst_5 {dimension_numbers = #tpu.dot_dimension_numbers<[1], [0], [0], [1], [0, 0, 1, 1], [], []>} : vector<16x16xf32>, vector<16x128xf32>, vector<16x128xf32> -> vector<16x128xf32>
    %c0_6 = arith.constant 0 : index
    %5 = memref.load %arg0[%c0_6] : memref<2xf32, #tpu.memory_space<smem>>
    %6 = vector.broadcast %5 : f32 to vector<16x128xf32>
    %7 = arith.mulf %6, %2 : vector<16x128xf32>
    %8 = arith.addf %4, %7 : vector<16x128xf32>
    %c0_7 = arith.constant 0 : index
    %c0_8 = arith.constant 0 : index
    %9 = vector.load %arg4[%c0_7, %c0_8] : memref<512x128xf32, #tpu.memory_space<vmem>>, vector<128x128xf32>
    %c0_9 = arith.constant 0 : index
    %c0_10 = arith.constant 0 : index
    %10 = vector.load %arg5[%c0_9, %c0_10] : memref<4x128xf32, #tpu.memory_space<vmem>>, vector<1x128xf32>
    %cst_11 = arith.constant dense<0.000000e+00> : vector<16x128xf32>
    %11 = tpu.matmul %8, %9, %cst_11 {dimension_numbers = #tpu.dot_dimension_numbers<[1], [0], [0], [1], [0, 0, 1, 1], [], []>} : vector<16x128xf32>, vector<128x128xf32>, vector<16x128xf32> -> vector<16x128xf32>
    %12 = vector.broadcast %10 : vector<1x128xf32> to vector<16x128xf32>
    %13 = arith.addf %11, %12 : vector<16x128xf32>
    %cst_12 = arith.constant 0.000000e+00 : f32
    %14 = vector.broadcast %cst_12 : f32 to vector<16x128xf32>
    %15 = arith.maximumf %13, %14 : vector<16x128xf32>
    %c128 = arith.constant 128 : index
    %c0_13 = arith.constant 0 : index
    %16 = vector.load %arg4[%c128, %c0_13] : memref<512x128xf32, #tpu.memory_space<vmem>>, vector<128x128xf32>
    %c1 = arith.constant 1 : index
    %c0_14 = arith.constant 0 : index
    %17 = vector.load %arg5[%c1, %c0_14] : memref<4x128xf32, #tpu.memory_space<vmem>>, vector<1x128xf32>
    %cst_15 = arith.constant dense<0.000000e+00> : vector<16x128xf32>
    %18 = tpu.matmul %15, %16, %cst_15 {dimension_numbers = #tpu.dot_dimension_numbers<[1], [0], [0], [1], [0, 0, 1, 1], [], []>} : vector<16x128xf32>, vector<128x128xf32>, vector<16x128xf32> -> vector<16x128xf32>
    %19 = vector.broadcast %17 : vector<1x128xf32> to vector<16x128xf32>
    %20 = arith.addf %18, %19 : vector<16x128xf32>
    %cst_16 = arith.constant 0.000000e+00 : f32
    %21 = vector.broadcast %cst_16 : f32 to vector<16x128xf32>
    %22 = arith.maximumf %20, %21 : vector<16x128xf32>
    %cst_17 = arith.constant dense<0.000000e+00> : vector<8x128xf32>
    %23 = tpu.matmul %1, %22, %cst_17 {dimension_numbers = #tpu.dot_dimension_numbers<[1], [0], [0], [1], [0, 0, 1, 1], [], []>} : vector<8x16xf32>, vector<16x128xf32>, vector<8x128xf32> -> vector<8x128xf32>
    %cst_18 = arith.constant dense<0.000000e+00> : vector<16x128xf32>
    %24 = tpu.matmul %0, %22, %cst_18 {dimension_numbers = #tpu.dot_dimension_numbers<[1], [0], [0], [1], [0, 0, 1, 1], [], []>} : vector<16x16xf32>, vector<16x128xf32>, vector<16x128xf32> -> vector<16x128xf32>
    %c1_19 = arith.constant 1 : index
    %25 = memref.load %arg0[%c1_19] : memref<2xf32, #tpu.memory_space<smem>>
    %26 = vector.broadcast %25 : f32 to vector<16x128xf32>
    %27 = arith.mulf %26, %22 : vector<16x128xf32>
    %28 = arith.addf %24, %27 : vector<16x128xf32>
    %c256 = arith.constant 256 : index
    %c0_20 = arith.constant 0 : index
    %29 = vector.load %arg4[%c256, %c0_20] : memref<512x128xf32, #tpu.memory_space<vmem>>, vector<128x128xf32>
    %c2 = arith.constant 2 : index
    %c0_21 = arith.constant 0 : index
    %30 = vector.load %arg5[%c2, %c0_21] : memref<4x128xf32, #tpu.memory_space<vmem>>, vector<1x128xf32>
    %cst_22 = arith.constant dense<0.000000e+00> : vector<16x128xf32>
    %31 = tpu.matmul %28, %29, %cst_22 {dimension_numbers = #tpu.dot_dimension_numbers<[1], [0], [0], [1], [0, 0, 1, 1], [], []>} : vector<16x128xf32>, vector<128x128xf32>, vector<16x128xf32> -> vector<16x128xf32>
    %32 = vector.broadcast %30 : vector<1x128xf32> to vector<16x128xf32>
    %33 = arith.addf %31, %32 : vector<16x128xf32>
    %cst_23 = arith.constant 0.000000e+00 : f32
    %34 = vector.broadcast %cst_23 : f32 to vector<16x128xf32>
    %35 = arith.maximumf %33, %34 : vector<16x128xf32>
    %c384 = arith.constant 384 : index
    %c0_24 = arith.constant 0 : index
    %36 = vector.load %arg4[%c384, %c0_24] : memref<512x128xf32, #tpu.memory_space<vmem>>, vector<128x128xf32>
    %c3 = arith.constant 3 : index
    %c0_25 = arith.constant 0 : index
    %37 = vector.load %arg5[%c3, %c0_25] : memref<4x128xf32, #tpu.memory_space<vmem>>, vector<1x128xf32>
    %cst_26 = arith.constant dense<0.000000e+00> : vector<16x128xf32>
    %38 = tpu.matmul %35, %36, %cst_26 {dimension_numbers = #tpu.dot_dimension_numbers<[1], [0], [0], [1], [0, 0, 1, 1], [], []>} : vector<16x128xf32>, vector<128x128xf32>, vector<16x128xf32> -> vector<16x128xf32>
    %39 = vector.broadcast %37 : vector<1x128xf32> to vector<16x128xf32>
    %40 = arith.addf %38, %39 : vector<16x128xf32>
    %cst_27 = arith.constant 0.000000e+00 : f32
    %41 = vector.broadcast %cst_27 : f32 to vector<16x128xf32>
    %42 = arith.maximumf %40, %41 : vector<16x128xf32>
    %cst_28 = arith.constant dense<0.000000e+00> : vector<8x128xf32>
    %43 = tpu.matmul %1, %42, %cst_28 {dimension_numbers = #tpu.dot_dimension_numbers<[1], [0], [0], [1], [0, 0, 1, 1], [], []>} : vector<8x16xf32>, vector<16x128xf32>, vector<8x128xf32> -> vector<8x128xf32>
    %44 = tpu.concatenate %3, %23, %43 in 1 : vector<8x128xf32>, vector<8x128xf32>, vector<8x128xf32> -> vector<8x384xf32>
    %c0_29 = arith.constant 0 : index
    %c0_30 = arith.constant 0 : index
    %45 = vector.load %arg6[%c0_29, %c0_30] : memref<384x128xf32, #tpu.memory_space<vmem>>, vector<384x128xf32>
    %cst_31 = arith.constant dense<0.000000e+00> : vector<8x128xf32>
    %46 = tpu.matmul %44, %45, %cst_31 {dimension_numbers = #tpu.dot_dimension_numbers<[1], [0], [0], [1], [0, 0, 1, 1], [], []>} : vector<8x384xf32>, vector<384x128xf32>, vector<8x128xf32> -> vector<8x128xf32>
    %c0_32 = arith.constant 0 : index
    %c0_33 = arith.constant 0 : index
    %47 = vector.load %arg7[%c0_32, %c0_33] : memref<1x128xf32, #tpu.memory_space<vmem>>, vector<1x128xf32>
    %48 = vector.broadcast %47 : vector<1x128xf32> to vector<8x128xf32>
    %49 = arith.addf %46, %48 : vector<8x128xf32>
    %c0_34 = arith.constant 0 : index
    %c0_35 = arith.constant 0 : index
    %50 = vector.load %arg8[%c0_34, %c0_35] : memref<8x128xf32, #tpu.memory_space<vmem>>, vector<8x128xf32>
    tpu.vector_store %arg8[%c0_34, %c0_35], %49 {strides = array<i32>} : memref<8x128xf32, #tpu.memory_space<vmem>>, vector<8x128xf32>,
    return
  }
}

</mosaic_0001>

<llo_original>
// kernel: tpu_custom_call.1
$region0: #{tpu_custom_call.1}
  #allocation0 [shape = 'u32[]', space=smem, size = 0x4, offset = 0x4, fixed_abs, tag = 'smem constant byte address 0x4 - core index']
  #allocation1 [shape = 'u32[144,128]{1,0:T(1,128)}', space=vmem, size = 0x12000, scoped, tag = 'internal scratch']
  %s0 = inlined_call_operand.hbm [shape: f32[2], index: 0, kind: input, shape index: {}]
  %s1 = inlined_call_operand.hbm [shape: f32[16,16], index: 1, kind: input, shape index: {}]
  %s2 = inlined_call_operand.hbm [shape: f32[8,16], index: 2, kind: input, shape index: {}]
  %s3 = inlined_call_operand.hbm [shape: f32[16,128], index: 3, kind: input, shape index: {}]
  %s4 = inlined_call_operand.hbm [shape: f32[512,128], index: 4, kind: input, shape index: {}]
  %s5 = inlined_call_operand.vmem [shape: f32[4,128], index: 5, kind: input, shape index: {}]
  %s6 = inlined_call_operand.hbm [shape: f32[384,128], index: 6, kind: input, shape index: {}]
  %s7 = inlined_call_operand.vmem [shape: f32[1,128], index: 7, kind: input, shape index: {}]
  %s8 = inlined_call_operand.hbm [shape: f32[8,128], index: 8, kind: output, shape index: {}]
  %s9 = sld [smem:[#allocation0]]
  $region66: #{tpu_custom_call.1} parent=0
    _
  %s11 = ssub.s32 1, %s9
  %s12 = scalar_select 0, %s11, %s9
  $region1: #{tpu_custom_call.1} parent=0
    #allocation2 [shape = 'u8[512]{0}', space=smem, size = 0x200, scoped, tag = 'input window, operand 0, single buffered']
    #allocation3 [shape = 's32[1]{0}', space=sflag, size = 0x4, scoped, tag = 'scoped memory for tpu_custom_call.1']
    #allocation4 [shape = 's32[1]{0}', space=sflag, size = 0x4, scoped, tag = 'scoped memory for tpu_custom_call.1']
    #allocation5 [shape = 's32[1]{0}', space=sflag, size = 0x4, scoped, tag = 'scoped memory for tpu_custom_call.1']
    #allocation6 [shape = 'u8[8192]{0}', space=vmem, size = 0x2000, scoped, tag = 'input window, operand 1, single buffered']
    #allocation7 [shape = 'u8[4096]{0}', space=vmem, size = 0x1000, scoped, tag = 'input window, operand 2, single buffered']
    #allocation8 [shape = 's32[1]{0}', space=sflag, size = 0x4, scoped, tag = 'scoped memory for tpu_custom_call.1']
    #allocation9 [shape = 'u8[8192]{0}', space=vmem, size = 0x2000, scoped, tag = 'input window, operand 3, single buffered']
    #allocation10 [shape = 'u8[262144]{0}', space=vmem, size = 0x40000, scoped, tag = 'input window, operand 4, single buffered']
    #allocation11 [shape = 's32[1]{0}', space=sflag, size = 0x4, scoped, tag = 'scoped memory for tpu_custom_call.1']
    #allocation12 [shape = 'u8[196608]{0}', space=vmem, size = 0x30000, scoped, tag = 'input window, operand 6, single buffered']
    #allocation13 [shape = 'u8[4096]{0}', space=vmem, size = 0x1000, scoped, tag = 'output window, operand 0, single buffered']
    %13 = vsyncpa [#allocation5], 0
    %14 = vsyncpa [#allocation3], 0
    %15 = vsyncpa [#allocation8], 0
    %16 = vsyncpa [#allocation11], 0
    %17 = vsyncpa [#allocation4], 0
    // Predicated region
    $region2: #{tpu_custom_call.1} parent=1 // pred_check
      _
    $region3: #{tpu_custom_call.1} parent=1 // pred_check_branch
      %19 = sbr.rel (0) target = $region5
    $region4: #{tpu_custom_call.1} parent=1 // pred_region
      %s21 = ssub.s32 16, 16
      %22 = vsyncadd [#allocation5], %s21
      %25 = dma.hbm_to_smem %s0, 16, [#allocation2], [#allocation5]
    $region5: #{tpu_custom_call.1} parent=1 // pred_fallthru
      _
    // Predicated region
    $region6: #{tpu_custom_call.1} parent=1 // pred_check
      _
    $region7: #{tpu_custom_call.1} parent=1 // pred_check_branch
      %27 = sbr.rel (0) target = $region9
    $region8: #{tpu_custom_call.1} parent=1 // pred_region
      %s29 = ssub.s32 256, 256
      %30 = vsyncadd [#allocation3], %s29
      %s31 = sshll.u32 [#allocation6], 4
      %s32 = int_to_ptr.vmem [resolvable:$true] %s31
      %37 = dma.hbm_to_vmem [thread:$0]  %s1, 256, %s32, [#allocation3], 128, 128, 8
    $region9: #{tpu_custom_call.1} parent=1 // pred_fallthru
      _
    // Predicated region
    $region10: #{tpu_custom_call.1} parent=1 // pred_check
      _
    $region11: #{tpu_custom_call.1} parent=1 // pred_check_branch
      %39 = sbr.rel (0) target = $region13
    $region12: #{tpu_custom_call.1} parent=1 // pred_region
      %s41 = ssub.s32 128, 128
      %42 = vsyncadd [#allocation8], %s41
      %s44 = sshll.u32 [#allocation7], 4
      %s45 = int_to_ptr.vmem [resolvable:$true] %s44
      %47 = dma.hbm_to_vmem [thread:$0]  %s2, 128, %s45, [#allocation8]
    $region13: #{tpu_custom_call.1} parent=1 // pred_fallthru
      _
    // Predicated region
    $region14: #{tpu_custom_call.1} parent=1 // pred_check
      _
    $region15: #{tpu_custom_call.1} parent=1 // pred_check_branch
      %49 = sbr.rel (0) target = $region17
    $region16: #{tpu_custom_call.1} parent=1 // pred_region
      %s51 = ssub.s32 256, 256
      %52 = vsyncadd [#allocation8], %s51
      %s53 = sshll.u32 [#allocation9], 4
      %s54 = int_to_ptr.vmem [resolvable:$true] %s53
      %59 = dma.hbm_to_vmem [thread:$0]  %s3, 256, %s54, [#allocation8], 128, 128, 8
    $region17: #{tpu_custom_call.1} parent=1 // pred_fallthru
      _
    // Predicated region
    $region18: #{tpu_custom_call.1} parent=1 // pred_check
      _
    $region19: #{tpu_custom_call.1} parent=1 // pred_check_branch
      %61 = sbr.rel (0) target = $region21
    $region20: #{tpu_custom_call.1} parent=1 // pred_region
      %s63 = ssub.s32 8192, 8192
      %64 = vsyncadd [#allocation11], %s63
      %s65 = sshll.u32 [#allocation10], 4
      %s66 = int_to_ptr.vmem [resolvable:$true] %s65
      %71 = dma.hbm_to_vmem [thread:$0]  %s4, 8192, %s66, [#allocation11], 128, 128, 8
    $region21: #{tpu_custom_call.1} parent=1 // pred_fallthru
      _
    // Predicated region
    $region22: #{tpu_custom_call.1} parent=1 // pred_check
      _
    $region23: #{tpu_custom_call.1} parent=1 // pred_check_branch
      %73 = sbr.rel (0) target = $region25
    $region24: #{tpu_custom_call.1} parent=1 // pred_region
      _
    $region25: #{tpu_custom_call.1} parent=1 // pred_fallthru
      _
    // Predicated region
    $region26: #{tpu_custom_call.1} parent=1 // pred_check
      _
    $region27: #{tpu_custom_call.1} parent=1 // pred_check_branch
      %75 = sbr.rel (0) target = $region29
    $region28: #{tpu_custom_call.1} parent=1 // pred_region
      %s77 = ssub.s32 6144, 6144
      %78 = vsyncadd [#allocation11], %s77
      %s79 = sshll.u32 [#allocation12], 4
      %s80 = int_to_ptr.vmem [resolvable:$true] %s79
      %85 = dma.hbm_to_vmem [thread:$0]  %s6, 6144, %s80, [#allocation11], 128, 128, 8
    $region29: #{tpu_custom_call.1} parent=1 // pred_fallthru
      _
    // Predicated region
    $region30: #{tpu_custom_call.1} parent=1 // pred_check
      _
    $region31: #{tpu_custom_call.1} parent=1 // pred_check_branch
      %87 = sbr.rel (0) target = $region33
    $region32: #{tpu_custom_call.1} parent=1 // pred_region
      _
    $region33: #{tpu_custom_call.1} parent=1 // pred_fallthru
      _
    // Predicated region
    $region34: #{tpu_custom_call.1} parent=1 // pred_check
      _
    $region35: #{tpu_custom_call.1} parent=1 // pred_check_branch
      %89 = sbr.rel (0) target = $region37
    $region36: #{tpu_custom_call.1} parent=1 // pred_region
      %90 = dma.done [#allocation5], 16
    $region37: #{tpu_custom_call.1} parent=1 // pred_fallthru
      _
    // Predicated region
    $region38: #{tpu_custom_call.1} parent=1 // pred_check
      _
    $region39: #{tpu_custom_call.1} parent=1 // pred_check_branch
      %92 = sbr.rel (0) target = $region41
    $region40: #{tpu_custom_call.1} parent=1 // pred_region
      %93 = dma.done [#allocation3], 256
    $region41: #{tpu_custom_call.1} parent=1 // pred_fallthru
      _
    // Predicated region
    $region42: #{tpu_custom_call.1} parent=1 // pred_check
      _
    $region43: #{tpu_custom_call.1} parent=1 // pred_check_branch
      %95 = sbr.rel (0) target = $region45
    $region44: #{tpu_custom_call.1} parent=1 // pred_region
      %96 = dma.done [#allocation8], 128
    $region45: #{tpu_custom_call.1} parent=1 // pred_fallthru
      _
    // Predicated region
    $region46: #{tpu_custom_call.1} parent=1 // pred_check
      _
    $region47: #{tpu_custom_call.1} parent=1 // pred_check_branch
      %98 = sbr.rel (0) target = $region49
    $region48: #{tpu_custom_call.1} parent=1 // pred_region
      %99 = dma.done [#allocation8], 256
    $region49: #{tpu_custom_call.1} parent=1 // pred_fallthru
      _
    // Predicated region
    $region50: #{tpu_custom_call.1} parent=1 // pred_check
      _
    $region51: #{tpu_custom_call.1} parent=1 // pred_check_branch
      %101 = sbr.rel (0) target = $region53
    $region52: #{tpu_custom_call.1} parent=1 // pred_region
      %102 = dma.done [#allocation11], 8192
    $region53: #{tpu_custom_call.1} parent=1 // pred_fallthru
      _
    // Predicated region
    $region54: #{tpu_custom_call.1} parent=1 // pred_check
      _
    $region55: #{tpu_custom_call.1} parent=1 // pred_check_branch
      %104 = sbr.rel (0) target = $region57
    $region56: #{tpu_custom_call.1} parent=1 // pred_region
      %105 = dma.done [#allocation11], 6144
    $region57: #{tpu_custom_call.1} parent=1 // pred_fallthru
      _
    %106 = sfence
    %v107 = vld [vmem:[#allocation6] sm:$0xff]
    %v108 = vld [vmem:[#allocation6 + $0x8] sm:$0xff]
    %v109 = vld [vmem:[#allocation7] sm:$0xff]
    %v110 = vld [vmem:[#allocation9] sm:$0xff]
    %v111 = vld [vmem:[#allocation9 + $0x8] sm:$0xff]
    %vm112 = vcmask 130048
    %v114 = vsel %vm112, %v109, 0
    %116 = vmatprep.subr.mxu0 0.0
    %117 = vmatpush1.msra.mxu0 %v110
    %118 = vmatprep.subr.mxu0 0.0
    %119 = vmatpush1.msra.mxu0 %v111
    %120 = vmatprep.subr.mxu0 0.0
    %121 = vmatpush1.msra.mxu0 0.0
    %122 = vmatprep.subr.mxu0 0.0
    %123 = vmatpush1.msra.mxu0 0.0
    %124 = vmatprep.subr.mxu0 0.0
    %125 = vmatpush1.msra.mxu0 0.0
    %126 = vmatprep.subr.mxu0 0.0
    %127 = vmatpush1.msra.mxu0 0.0
    %128 = vmatprep.subr.mxu0 0.0
    %129 = vmatpush1.msra.mxu0 0.0
    %130 = vmatprep.subr.mxu0 0.0
    %131 = vmatpush1.msra.mxu0 0.0
    %132 = vmatprep.subr.mxu0 0.0
    %133 = vmatpush1.msra.mxu0 0.0
    %134 = vmatprep.subr.mxu0 0.0
    %135 = vmatpush1.msra.mxu0 0.0
    %136 = vmatprep.subr.mxu0 0.0
    %137 = vmatpush1.msra.mxu0 0.0
    %138 = vmatprep.subr.mxu0 0.0
    %139 = vmatpush1.msra.mxu0 0.0
    %140 = vmatprep.subr.mxu0 0.0
    %141 = vmatpush1.msra.mxu0 0.0
    %142 = vmatprep.subr.mxu0 0.0
    %143 = vmatpush1.msra.mxu0 0.0
    %144 = vmatprep.subr.mxu0 0.0
    %145 = vmatpush1.msra.mxu0 0.0
    %146 = vmatprep.subr.mxu0 0.0
    %147 = vmatpush1.msra.mxu0 0.0
    %148 = vmatprep.subr.mxu0 0.0
    %149 = vmatpush1.msra.mxu0 0.0
    %150 = vmatprep.subr.mxu0 0.0
    %151 = vmatpush1.msra.mxu0 0.0
    %152 = vmatprep.subr.mxu0 0.0
    %153 = vmatpush1.msra.mxu0 0.0
    %154 = vmatprep.subr.mxu0 0.0
    %155 = vmatpush1.msra.mxu0 0.0
    %156 = vmatprep.subr.mxu0 0.0
    %157 = vmatpush1.msra.mxu0 0.0
    %158 = vmatprep.subr.mxu0 0.0
    %159 = vmatpush1.msra.mxu0 0.0
    %160 = vmatprep.subr.mxu0 0.0
    %161 = vmatpush1.msra.mxu0 0.0
    %162 = vmatprep.subr.mxu0 0.0
    %163 = vmatpush1.msra.mxu0 0.0
    %164 = vmatprep.subr.mxu0 0.0
    %165 = vmatpush1.msra.mxu0 0.0
    %166 = vmatprep.subr.mxu0 0.0
    %167 = vmatpush1.msra.mxu0 0.0
    %168 = vmatprep.subr.mxu0 0.0
    %169 = vmatpush1.msra.mxu0 0.0
    %170 = vmatprep.subr.mxu0 0.0
    %171 = vmatpush1.msra.mxu0 0.0
    %172 = vmatprep.subr.mxu0 0.0
    %173 = vmatpush1.msra.mxu0 0.0
    %174 = vmatprep.subr.mxu0 0.0
    %175 = vmatpush1.msra.mxu0 0.0
    %176 = vmatprep.subr.mxu0 0.0
    %177 = vmatpush1.msra.mxu0 0.0
    %178 = vmatprep.subr.mxu0 0.0
    %179 = vmatpush1.msra.mxu0 0.0
    %180 = vmatprep.mubr.f32.mxu0 0.0
    %181 = vmatmul.mubr.f32.gmra.mrb[0].mxu0 %v114
    %v182 = vpop.f32.mrb[0].mxu0
    %v183 = vadd.f32 0.0, %v182
    %v184 = vpop.f32.mrb[0].mxu0
    %185 = vdwg.mxu0
    %s186 = sld [smem:[#allocation2]]
    %v187 = vstv %s186
    %v188 = vmul.f32 %v187, %v110
    %v189 = vmul.f32 %v187, %v111
    %v191 = vsel %vm112, %v107, 0
    %v194 = vsel %vm112, %v108, 0
    %196 = vmatprep.subr.mxu0 0.0
    %197 = vmatpush1.msra.mxu0 %v110
    %198 = vmatprep.subr.mxu0 0.0
    %199 = vmatpush1.msra.mxu0 %v111
    %200 = vmatprep.subr.mxu0 0.0
    %201 = vmatpush1.msra.mxu0 0.0
    %202 = vmatprep.subr.mxu0 0.0
    %203 = vmatpush1.msra.mxu0 0.0
    %204 = vmatprep.subr.mxu0 0.0
    %205 = vmatpush1.msra.mxu0 0.0
    %206 = vmatprep.subr.mxu0 0.0
    %207 = vmatpush1.msra.mxu0 0.0
    %208 = vmatprep.subr.mxu0 0.0
    %209 = vmatpush1.msra.mxu0 0.0
    %210 = vmatprep.subr.mxu0 0.0
    %211 = vmatpush1.msra.mxu0 0.0
    %212 = vmatprep.subr.mxu0 0.0
    %213 = vmatpush1.msra.mxu0 0.0
    %214 = vmatprep.subr.mxu0 0.0
    %215 = vmatpush1.msra.mxu0 0.0
    %216 = vmatprep.subr.mxu0 0.0
    %217 = vmatpush1.msra.mxu0 0.0
    %218 = vmatprep.subr.mxu0 0.0
    %219 = vmatpush1.msra.mxu0 0.0
    %220 = vmatprep.subr.mxu0 0.0
    %221 = vmatpush1.msra.mxu0 0.0
    %222 = vmatprep.subr.mxu0 0.0
    %223 = vmatpush1.msra.mxu0 0.0
    %224 = vmatprep.subr.mxu0 0.0
    %225 = vmatpush1.msra.mxu0 0.0
    %226 = vmatprep.subr.mxu0 0.0
    %227 = vmatpush1.msra.mxu0 0.0
    %228 = vmatprep.subr.mxu0 0.0
    %229 = vmatpush1.msra.mxu0 0.0
    %230 = vmatprep.subr.mxu0 0.0
    %231 = vmatpush1.msra.mxu0 0.0
    %232 = vmatprep.subr.mxu0 0.0
    %233 = vmatpush1.msra.mxu0 0.0
    %234 = vmatprep.subr.mxu0 0.0
    %235 = vmatpush1.msra.mxu0 0.0
    %236 = vmatprep.subr.mxu0 0.0
    %237 = vmatpush1.msra.mxu0 0.0
    %238 = vmatprep.subr.mxu0 0.0
    %239 = vmatpush1.msra.mxu0 0.0
    %240 = vmatprep.subr.mxu0 0.0
    %241 = vmatpush1.msra.mxu0 0.0
    %242 = vmatprep.subr.mxu0 0.0
    %243 = vmatpush1.msra.mxu0 0.0
    %244 = vmatprep.subr.mxu0 0.0
    %245 = vmatpush1.msra.mxu0 0.0
    %246 = vmatprep.subr.mxu0 0.0
    %247 = vmatpush1.msra.mxu0 0.0
    %248 = vmatprep.subr.mxu0 0.0
    %249 = vmatpush1.msra.mxu0 0.0
    %250 = vmatprep.subr.mxu0 0.0
    %251 = vmatpush1.msra.mxu0 0.0
    %252 = vmatprep.subr.mxu0 0.0
    %253 = vmatpush1.msra.mxu0 0.0
    %254 = vmatprep.subr.mxu0 0.0
    %255 = vmatpush1.msra.mxu0 0.0
    %256 = vmatprep.subr.mxu0 0.0
    %257 = vmatpush1.msra.mxu0 0.0
    %258 = vmatprep.subr.mxu0 0.0
    %259 = vmatpush1.msra.mxu0 0.0
    %260 = vmatprep.mubr.f32.mxu0 0.0
    %261 = vmatmul.mubr.f32.gmra.mrb[0].mxu0 %v191
    %v262 = vpop.f32.mrb[0].mxu0
    %v263 = vadd.f32 %v188, %v262
    %v264 = vpop.f32.mrb[0].mxu0
    %265 = vmatprep.mubr.f32.mxu0 0.0
    %266 = vmatmul.mubr.f32.gmra.mrb[0].mxu0 %v194
    %v267 = vpop.f32.mrb[0].mxu0
    %v268 = vadd.f32 %v189, %v267
    %v269 = vpop.f32.mrb[0].mxu0
    %270 = vdwg.mxu0
    %v271 = vld [vmem:[#allocation10] sm:$0xff]
    %v272 = vld [vmem:[#allocation10 + $0x8] sm:$0xff]
    %v273 = vld [vmem:[#allocation10 + $0x10] sm:$0xff]
    %v274 = vld [vmem:[#allocation10 + $0x18] sm:$0xff]
    %v275 = vld [vmem:[#allocation10 + $0x20] sm:$0xff]
    %v276 = vld [vmem:[#allocation10 + $0x28] sm:$0xff]
    %v277 = vld [vmem:[#allocation10 + $0x30] sm:$0xff]
    %v278 = vld [vmem:[#allocation10 + $0x38] sm:$0xff]
    %v279 = vld [vmem:[#allocation10 + $0x40] sm:$0xff]
    %v280 = vld [vmem:[#allocation10 + $0x48] sm:$0xff]
    %v281 = vld [vmem:[#allocation10 + $0x50] sm:$0xff]
    %v282 = vld [vmem:[#allocation10 + $0x58] sm:$0xff]
    %v283 = vld [vmem:[#allocation10 + $0x60] sm:$0xff]
    %v284 = vld [vmem:[#allocation10 + $0x68] sm:$0xff]
    %v285 = vld [vmem:[#allocation10 + $0x70] sm:$0xff]
    %v286 = vld [vmem:[#allocation10 + $0x78] sm:$0xff]
    %v287 = vld [vmem:[%s5] sm:$0x1]
    %v288 = vlaneseq
    %v289 = vshrl.u32 %v288, 7
    %v290 = vsub.s32 0, %v289
    %v291 = vrot.slane %v287, %v290
    %292 = vmatprep.subr.mxu0 0.0
    %293 = vmatpush1.msra.mxu0 %v271
    %294 = vmatprep.subr.mxu0 0.0
    %295 = vmatpush1.msra.mxu0 %v272
    %296 = vmatprep.subr.mxu0 0.0
    %297 = vmatpush1.msra.mxu0 %v273
    %298 = vmatprep.subr.mxu0 0.0
    %299 = vmatpush1.msra.mxu0 %v274
    %300 = vmatprep.subr.mxu0 0.0
    %301 = vmatpush1.msra.mxu0 %v275
    %302 = vmatprep.subr.mxu0 0.0
    %303 = vmatpush1.msra.mxu0 %v276
    %304 = vmatprep.subr.mxu0 0.0
    %305 = vmatpush1.msra.mxu0 %v277
    %306 = vmatprep.subr.mxu0 0.0
    %307 = vmatpush1.msra.mxu0 %v278
    %308 = vmatprep.subr.mxu0 0.0
    %309 = vmatpush1.msra.mxu0 %v279
    %310 = vmatprep.subr.mxu0 0.0
    %311 = vmatpush1.msra.mxu0 %v280
    %312 = vmatprep.subr.mxu0 0.0
    %313 = vmatpush1.msra.mxu0 %v281
    %314 = vmatprep.subr.mxu0 0.0
    %315 = vmatpush1.msra.mxu0 %v282
    %316 = vmatprep.subr.mxu0 0.0
    %317 = vmatpush1.msra.mxu0 %v283
    %318 = vmatprep.subr.mxu0 0.0
    %319 = vmatpush1.msra.mxu0 %v284
    %320 = vmatprep.subr.mxu0 0.0
    %321 = vmatpush1.msra.mxu0 %v285
    %322 = vmatprep.subr.mxu0 0.0
    %323 = vmatpush1.msra.mxu0 %v286
    %324 = vmatprep.subr.mxu0 0.0
    %325 = vmatpush1.msra.mxu0 0.0
    %326 = vmatprep.subr.mxu0 0.0
    %327 = vmatpush1.msra.mxu0 0.0
    %328 = vmatprep.subr.mxu0 0.0
    %329 = vmatpush1.msra.mxu0 0.0
    %330 = vmatprep.subr.mxu0 0.0
    %331 = vmatpush1.msra.mxu0 0.0
    %332 = vmatprep.subr.mxu0 0.0
    %333 = vmatpush1.msra.mxu0 0.0
    %334 = vmatprep.subr.mxu0 0.0
    %335 = vmatpush1.msra.mxu0 0.0
    %336 = vmatprep.subr.mxu0 0.0
    %337 = vmatpush1.msra.mxu0 0.0
    %338 = vmatprep.subr.mxu0 0.0
    %339 = vmatpush1.msra.mxu0 0.0
    %340 = vmatprep.subr.mxu0 0.0
    %341 = vmatpush1.msra.mxu0 0.0
    %342 = vmatprep.subr.mxu0 0.0
    %343 = vmatpush1.msra.mxu0 0.0
    %344 = vmatprep.subr.mxu0 0.0
    %345 = vmatpush1.msra.mxu0 0.0
    %346 = vmatprep.subr.mxu0 0.0
    %347 = vmatpush1.msra.mxu0 0.0
    %348 = vmatprep.subr.mxu0 0.0
    %349 = vmatpush1.msra.mxu0 0.0
    %350 = vmatprep.subr.mxu0 0.0
    %351 = vmatpush1.msra.mxu0 0.0
    %352 = vmatprep.subr.mxu0 0.0
    %353 = vmatpush1.msra.mxu0 0.0
    %354 = vmatprep.subr.mxu0 0.0
    %355 = vmatpush1.msra.mxu0 0.0
    %356 = vmatprep.mubr.f32.mxu0 0.0
    %357 = vmatmul.mubr.f32.gmra.mrb[0].mxu0 %v263
    %v358 = vpop.f32.mrb[0].mxu0
    %v359 = vadd.f32 %v291, %v358
    %v360 = vpop.f32.mrb[0].mxu0
    %361 = vmatprep.mubr.f32.mxu0 0.0
    %362 = vmatmul.mubr.f32.gmra.mrb[0].mxu0 %v268
    %v363 = vpop.f32.mrb[0].mxu0
    %v364 = vadd.f32 %v291, %v363
    %v365 = vpop.f32.mrb[0].mxu0
    %366 = vdwg.mxu0
    %v367 = vmax.f32 %v359, 0.0
    %v368 = vmax.f32 %v364, 0.0
    %v369 = vld [vmem:[#allocation10 + $0x80] sm:$0xff]
    %v370 = vld [vmem:[#allocation10 + $0x88] sm:$0xff]
    %v371 = vld [vmem:[#allocation10 + $0x90] sm:$0xff]
    %v372 = vld [vmem:[#allocation10 + $0x98] sm:$0xff]
    %v373 = vld [vmem:[#allocation10 + $0xa0] sm:$0xff]
    %v374 = vld [vmem:[#allocation10 + $0xa8] sm:$0xff]
    %v375 = vld [vmem:[#allocation10 + $0xb0] sm:$0xff]
    %v376 = vld [vmem:[#allocation10 + $0xb8] sm:$0xff]
    %v377 = vld [vmem:[#allocation10 + $0xc0] sm:$0xff]
    %v378 = vld [vmem:[#allocation10 + $0xc8] sm:$0xff]
    %v379 = vld [vmem:[#allocation10 + $0xd0] sm:$0xff]
    %v380 = vld [vmem:[#allocation10 + $0xd8] sm:$0xff]
    %v381 = vld [vmem:[#allocation10 + $0xe0] sm:$0xff]
    %v382 = vld [vmem:[#allocation10 + $0xe8] sm:$0xff]
    %v383 = vld [vmem:[#allocation10 + $0xf0] sm:$0xff]
    %v384 = vld [vmem:[#allocation10 + $0xf8] sm:$0xff]
    %v385 = vld [vmem:[%s5 + $0x1] sm:$0x1]
    %v386 = vlaneseq
    %v387 = vshrl.u32 %v386, 7
    %v388 = vsub.s32 0, %v387
    %v389 = vrot.slane %v385, %v388
    %390 = vmatprep.subr.mxu0 0.0
    %391 = vmatpush1.msra.mxu0 %v369
    %392 = vmatprep.subr.mxu0 0.0
    %393 = vmatpush1.msra.mxu0 %v370
    %394 = vmatprep.subr.mxu0 0.0
    %395 = vmatpush1.msra.mxu0 %v371
    %396 = vmatprep.subr.mxu0 0.0
    %397 = vmatpush1.msra.mxu0 %v372
    %398 = vmatprep.subr.mxu0 0.0
    %399 = vmatpush1.msra.mxu0 %v373
    %400 = vmatprep.subr.mxu0 0.0
    %401 = vmatpush1.msra.mxu0 %v374
    %402 = vmatprep.subr.mxu0 0.0
    %403 = vmatpush1.msra.mxu0 %v375
    %404 = vmatprep.subr.mxu0 0.0
    %405 = vmatpush1.msra.mxu0 %v376
    %406 = vmatprep.subr.mxu0 0.0
    %407 = vmatpush1.msra.mxu0 %v377
    %408 = vmatprep.subr.mxu0 0.0
    %409 = vmatpush1.msra.mxu0 %v378
    %410 = vmatprep.subr.mxu0 0.0
    %411 = vmatpush1.msra.mxu0 %v379
    %412 = vmatprep.subr.mxu0 0.0
    %413 = vmatpush1.msra.mxu0 %v380
    %414 = vmatprep.subr.mxu0 0.0
    %415 = vmatpush1.msra.mxu0 %v381
    %416 = vmatprep.subr.mxu0 0.0
    %417 = vmatpush1.msra.mxu0 %v382
    %418 = vmatprep.subr.mxu0 0.0
    %419 = vmatpush1.msra.mxu0 %v383
    %420 = vmatprep.subr.mxu0 0.0
    %421 = vmatpush1.msra.mxu0 %v384
    %422 = vmatprep.subr.mxu0 0.0
    %423 = vmatpush1.msra.mxu0 0.0
    %424 = vmatprep.subr.mxu0 0.0
    %425 = vmatpush1.msra.mxu0 0.0
    %426 = vmatprep.subr.mxu0 0.0
    %427 = vmatpush1.msra.mxu0 0.0
    %428 = vmatprep.subr.mxu0 0.0
    %429 = vmatpush1.msra.mxu0 0.0
    %430 = vmatprep.subr.mxu0 0.0
    %431 = vmatpush1.msra.mxu0 0.0
    %432 = vmatprep.subr.mxu0 0.0
    %433 = vmatpush1.msra.mxu0 0.0
    %434 = vmatprep.subr.mxu0 0.0
    %435 = vmatpush1.msra.mxu0 0.0
    %436 = vmatprep.subr.mxu0 0.0
    %437 = vmatpush1.msra.mxu0 0.0
    %438 = vmatprep.subr.mxu0 0.0
    %439 = vmatpush1.msra.mxu0 0.0
    %440 = vmatprep.subr.mxu0 0.0
    %441 = vmatpush1.msra.mxu0 0.0
    %442 = vmatprep.subr.mxu0 0.0
    %443 = vmatpush1.msra.mxu0 0.0
    %444 = vmatprep.subr.mxu0 0.0
    %445 = vmatpush1.msra.mxu0 0.0
    %446 = vmatprep.subr.mxu0 0.0
    %447 = vmatpush1.msra.mxu0 0.0
    %448 = vmatprep.subr.mxu0 0.0
    %449 = vmatpush1.msra.mxu0 0.0
    %450 = vmatprep.subr.mxu0 0.0
    %451 = vmatpush1.msra.mxu0 0.0
    %452 = vmatprep.subr.mxu0 0.0
    %453 = vmatpush1.msra.mxu0 0.0
    %454 = vmatprep.mubr.f32.mxu0 0.0
    %455 = vmatmul.mubr.f32.gmra.mrb[0].mxu0 %v367
    %v456 = vpop.f32.mrb[0].mxu0
    %v457 = vadd.f32 %v389, %v456
    %v458 = vpop.f32.mrb[0].mxu0
    %459 = vmatprep.mubr.f32.mxu0 0.0
    %460 = vmatmul.mubr.f32.gmra.mrb[0].mxu0 %v368
    %v461 = vpop.f32.mrb[0].mxu0
    %v462 = vadd.f32 %v389, %v461
    %v463 = vpop.f32.mrb[0].mxu0
    %464 = vdwg.mxu0
    %v465 = vmax.f32 %v457, 0.0
    %v466 = vmax.f32 %v462, 0.0
    %467 = vmatprep.subr.mxu0 0.0
    %468 = vmatpush1.msra.mxu0 %v465
    %469 = vmatprep.subr.mxu0 0.0
    %470 = vmatpush1.msra.mxu0 %v466
    %471 = vmatprep.subr.mxu0 0.0
    %472 = vmatpush1.msra.mxu0 0.0
    %473 = vmatprep.subr.mxu0 0.0
    %474 = vmatpush1.msra.mxu0 0.0
    %475 = vmatprep.subr.mxu0 0.0
    %476 = vmatpush1.msra.mxu0 0.0
    %477 = vmatprep.subr.mxu0 0.0
    %478 = vmatpush1.msra.mxu0 0.0
    %479 = vmatprep.subr.mxu0 0.0
    %480 = vmatpush1.msra.mxu0 0.0
    %481 = vmatprep.subr.mxu0 0.0
    %482 = vmatpush1.msra.mxu0 0.0
    %483 = vmatprep.subr.mxu0 0.0
    %484 = vmatpush1.msra.mxu0 0.0
    %485 = vmatprep.subr.mxu0 0.0
    %486 = vmatpush1.msra.mxu0 0.0
    %487 = vmatprep.subr.mxu0 0.0
    %488 = vmatpush1.msra.mxu0 0.0
    %489 = vmatprep.subr.mxu0 0.0
    %490 = vmatpush1.msra.mxu0 0.0
    %491 = vmatprep.subr.mxu0 0.0
    %492 = vmatpush1.msra.mxu0 0.0
    %493 = vmatprep.subr.mxu0 0.0
    %494 = vmatpush1.msra.mxu0 0.0
    %495 = vmatprep.subr.mxu0 0.0
    %496 = vmatpush1.msra.mxu0 0.0
    %497 = vmatprep.subr.mxu0 0.0
    %498 = vmatpush1.msra.mxu0 0.0
    %499 = vmatprep.subr.mxu0 0.0
    %500 = vmatpush1.msra.mxu0 0.0
    %501 = vmatprep.subr.mxu0 0.0
    %502 = vmatpush1.msra.mxu0 0.0
    %503 = vmatprep.subr.mxu0 0.0
    %504 = vmatpush1.msra.mxu0 0.0
    %505 = vmatprep.subr.mxu0 0.0
    %506 = vmatpush1.msra.mxu0 0.0
    %507 = vmatprep.subr.mxu0 0.0
    %508 = vmatpush1.msra.mxu0 0.0
    %509 = vmatprep.subr.mxu0 0.0
    %510 = vmatpush1.msra.mxu0 0.0
    %511 = vmatprep.subr.mxu0 0.0
    %512 = vmatpush1.msra.mxu0 0.0
    %513 = vmatprep.subr.mxu0 0.0
    %514 = vmatpush1.msra.mxu0 0.0
    %515 = vmatprep.subr.mxu0 0.0
    %516 = vmatpush1.msra.mxu0 0.0
    %517 = vmatprep.subr.mxu0 0.0
    %518 = vmatpush1.msra.mxu0 0.0
    %519 = vmatprep.subr.mxu0 0.0
    %520 = vmatpush1.msra.mxu0 0.0
    %521 = vmatprep.subr.mxu0 0.0
    %522 = vmatpush1.msra.mxu0 0.0
    %523 = vmatprep.subr.mxu0 0.0
    %524 = vmatpush1.msra.mxu0 0.0
    %525 = vmatprep.subr.mxu0 0.0
    %526 = vmatpush1.msra.mxu0 0.0
    %527 = vmatprep.subr.mxu0 0.0
    %528 = vmatpush1.msra.mxu0 0.0
    %529 = vmatprep.subr.mxu0 0.0
    %530 = vmatpush1.msra.mxu0 0.0
    %531 = vmatprep.mubr.f32.mxu0 0.0
    %532 = vmatmul.mubr.f32.gmra.mrb[0].mxu0 %v114
    %v533 = vpop.f32.mrb[0].mxu0
    %v534 = vadd.f32 0.0, %v533
    %v535 = vpop.f32.mrb[0].mxu0
    %536 = vdwg.mxu0
    %s537 = sld [smem:[#allocation2 + $0x1]]
    %v538 = vstv %s537
    %v539 = vmul.f32 %v538, %v465
    %v540 = vmul.f32 %v538, %v466
    %541 = vmatprep.subr.mxu0 0.0
    %542 = vmatpush1.msra.mxu0 %v465
    %543 = vmatprep.subr.mxu0 0.0
    %544 = vmatpush1.msra.mxu0 %v466
    %545 = vmatprep.subr.mxu0 0.0
    %546 = vmatpush1.msra.mxu0 0.0
    %547 = vmatprep.subr.mxu0 0.0
    %548 = vmatpush1.msra.mxu0 0.0
    %549 = vmatprep.subr.mxu0 0.0
    %550 = vmatpush1.msra.mxu0 0.0
    %551 = vmatprep.subr.mxu0 0.0
    %552 = vmatpush1.msra.mxu0 0.0
    %553 = vmatprep.subr.mxu0 0.0
    %554 = vmatpush1.msra.mxu0 0.0
    %555 = vmatprep.subr.mxu0 0.0
    %556 = vmatpush1.msra.mxu0 0.0
    %557 = vmatprep.subr.mxu0 0.0
    %558 = vmatpush1.msra.mxu0 0.0
    %559 = vmatprep.subr.mxu0 0.0
    %560 = vmatpush1.msra.mxu0 0.0
    %561 = vmatprep.subr.mxu0 0.0
    %562 = vmatpush1.msra.mxu0 0.0
    %563 = vmatprep.subr.mxu0 0.0
    %564 = vmatpush1.msra.mxu0 0.0
    %565 = vmatprep.subr.mxu0 0.0
    %566 = vmatpush1.msra.mxu0 0.0
    %567 = vmatprep.subr.mxu0 0.0
    %568 = vmatpush1.msra.mxu0 0.0
    %569 = vmatprep.subr.mxu0 0.0
    %570 = vmatpush1.msra.mxu0 0.0
    %571 = vmatprep.subr.mxu0 0.0
    %572 = vmatpush1.msra.mxu0 0.0
    %573 = vmatprep.subr.mxu0 0.0
    %574 = vmatpush1.msra.mxu0 0.0
    %575 = vmatprep.subr.mxu0 0.0
    %576 = vmatpush1.msra.mxu0 0.0
    %577 = vmatprep.subr.mxu0 0.0
    %578 = vmatpush1.msra.mxu0 0.0
    %579 = vmatprep.subr.mxu0 0.0
    %580 = vmatpush1.msra.mxu0 0.0
    %581 = vmatprep.subr.mxu0 0.0
    %582 = vmatpush1.msra.mxu0 0.0
    %583 = vmatprep.subr.mxu0 0.0
    %584 = vmatpush1.msra.mxu0 0.0
    %585 = vmatprep.subr.mxu0 0.0
    %586 = vmatpush1.msra.mxu0 0.0
    %587 = vmatprep.subr.mxu0 0.0
    %588 = vmatpush1.msra.mxu0 0.0
    %589 = vmatprep.subr.mxu0 0.0
    %590 = vmatpush1.msra.mxu0 0.0
    %591 = vmatprep.subr.mxu0 0.0
    %592 = vmatpush1.msra.mxu0 0.0
    %593 = vmatprep.subr.mxu0 0.0
    %594 = vmatpush1.msra.mxu0 0.0
    %595 = vmatprep.subr.mxu0 0.0
    %596 = vmatpush1.msra.mxu0 0.0
    %597 = vmatprep.subr.mxu0 0.0
    %598 = vmatpush1.msra.mxu0 0.0
    %599 = vmatprep.subr.mxu0 0.0
    %600 = vmatpush1.msra.mxu0 0.0
    %601 = vmatprep.subr.mxu0 0.0
    %602 = vmatpush1.msra.mxu0 0.0
    %603 = vmatprep.subr.mxu0 0.0
    %604 = vmatpush1.msra.mxu0 0.0
    %605 = vmatprep.mubr.f32.mxu0 0.0
    %606 = vmatmul.mubr.f32.gmra.mrb[0].mxu0 %v191
    %v607 = vpop.f32.mrb[0].mxu0
    %v608 = vadd.f32 %v539, %v607
    %v609 = vpop.f32.mrb[0].mxu0
    %610 = vmatprep.mubr.f32.mxu0 0.0
    %611 = vmatmul.mubr.f32.gmra.mrb[0].mxu0 %v194
    %v612 = vpop.f32.mrb[0].mxu0
    %v613 = vadd.f32 %v540, %v612
    %v614 = vpop.f32.mrb[0].mxu0
    %615 = vdwg.mxu0
    %v616 = vld [vmem:[#allocation10 + $0x100] sm:$0xff]
    %v617 = vld [vmem:[#allocation10 + $0x108] sm:$0xff]
    %v618 = vld [vmem:[#allocation10 + $0x110] sm:$0xff]
    %v619 = vld [vmem:[#allocation10 + $0x118] sm:$0xff]
    %v620 = vld [vmem:[#allocation10 + $0x120] sm:$0xff]
    %v621 = vld [vmem:[#allocation10 + $0x128] sm:$0xff]
    %v622 = vld [vmem:[#allocation10 + $0x130] sm:$0xff]
    %v623 = vld [vmem:[#allocation10 + $0x138] sm:$0xff]
    %v624 = vld [vmem:[#allocation10 + $0x140] sm:$0xff]
    %v625 = vld [vmem:[#allocation10 + $0x148] sm:$0xff]
    %v626 = vld [vmem:[#allocation10 + $0x150] sm:$0xff]
    %v627 = vld [vmem:[#allocation10 + $0x158] sm:$0xff]
    %v628 = vld [vmem:[#allocation10 + $0x160] sm:$0xff]
    %v629 = vld [vmem:[#allocation10 + $0x168] sm:$0xff]
    %v630 = vld [vmem:[#allocation10 + $0x170] sm:$0xff]
    %v631 = vld [vmem:[#allocation10 + $0x178] sm:$0xff]
    %v632 = vld [vmem:[%s5 + $0x2] sm:$0x1]
    %v633 = vlaneseq
    %v634 = vshrl.u32 %v633, 7
    %v635 = vsub.s32 0, %v634
    %v636 = vrot.slane %v632, %v635
    %637 = vmatprep.subr.mxu0 0.0
    %638 = vmatpush1.msra.mxu0 %v616
    %639 = vmatprep.subr.mxu0 0.0
    %640 = vmatpush1.msra.mxu0 %v617
    %641 = vmatprep.subr.mxu0 0.0
    %642 = vmatpush1.msra.mxu0 %v618
    %643 = vmatprep.subr.mxu0 0.0
    %644 = vmatpush1.msra.mxu0 %v619
    %645 = vmatprep.subr.mxu0 0.0
    %646 = vmatpush1.msra.mxu0 %v620
    %647 = vmatprep.subr.mxu0 0.0
    %648 = vmatpush1.msra.mxu0 %v621
    %649 = vmatprep.subr.mxu0 0.0
    %650 = vmatpush1.msra.mxu0 %v622
    %651 = vmatprep.subr.mxu0 0.0
    %652 = vmatpush1.msra.mxu0 %v623
    %653 = vmatprep.subr.mxu0 0.0
    %654 = vmatpush1.msra.mxu0 %v624
    %655 = vmatprep.subr.mxu0 0.0
    %656 = vmatpush1.msra.mxu0 %v625
    %657 = vmatprep.subr.mxu0 0.0
    %658 = vmatpush1.msra.mxu0 %v626
    %659 = vmatprep.subr.mxu0 0.0
    %660 = vmatpush1.msra.mxu0 %v627
    %661 = vmatprep.subr.mxu0 0.0
    %662 = vmatpush1.msra.mxu0 %v628
    %663 = vmatprep.subr.mxu0 0.0
    %664 = vmatpush1.msra.mxu0 %v629
    %665 = vmatprep.subr.mxu0 0.0
    %666 = vmatpush1.msra.mxu0 %v630
    %667 = vmatprep.subr.mxu0 0.0
    %668 = vmatpush1.msra.mxu0 %v631
    %669 = vmatprep.subr.mxu0 0.0
    %670 = vmatpush1.msra.mxu0 0.0
    %671 = vmatprep.subr.mxu0 0.0
    %672 = vmatpush1.msra.mxu0 0.0
    %673 = vmatprep.subr.mxu0 0.0
    %674 = vmatpush1.msra.mxu0 0.0
    %675 = vmatprep.subr.mxu0 0.0
    %676 = vmatpush1.msra.mxu0 0.0
    %677 = vmatprep.subr.mxu0 0.0
    %678 = vmatpush1.msra.mxu0 0.0
    %679 = vmatprep.subr.mxu0 0.0
    %680 = vmatpush1.msra.mxu0 0.0
    %681 = vmatprep.subr.mxu0 0.0
    %682 = vmatpush1.msra.mxu0 0.0
    %683 = vmatprep.subr.mxu0 0.0
    %684 = vmatpush1.msra.mxu0 0.0
    %685 = vmatprep.subr.mxu0 0.0
    %686 = vmatpush1.msra.mxu0 0.0
    %687 = vmatprep.subr.mxu0 0.0
    %688 = vmatpush1.msra.mxu0 0.0
    %689 = vmatprep.subr.mxu0 0.0
    %690 = vmatpush1.msra.mxu0 0.0
    %691 = vmatprep.subr.mxu0 0.0
    %692 = vmatpush1.msra.mxu0 0.0
    %693 = vmatprep.subr.mxu0 0.0
    %694 = vmatpush1.msra.mxu0 0.0
    %695 = vmatprep.subr.mxu0 0.0
    %696 = vmatpush1.msra.mxu0 0.0
    %697 = vmatprep.subr.mxu0 0.0
    %698 = vmatpush1.msra.mxu0 0.0
    %699 = vmatprep.subr.mxu0 0.0
    %700 = vmatpush1.msra.mxu0 0.0
    %701 = vmatprep.mubr.f32.mxu0 0.0
    %702 = vmatmul.mubr.f32.gmra.mrb[0].mxu0 %v608
    %v703 = vpop.f32.mrb[0].mxu0
    %v704 = vadd.f32 %v636, %v703
    %v705 = vpop.f32.mrb[0].mxu0
    %706 = vmatprep.mubr.f32.mxu0 0.0
    %707 = vmatmul.mubr.f32.gmra.mrb[0].mxu0 %v613
    %v708 = vpop.f32.mrb[0].mxu0
    %v709 = vadd.f32 %v636, %v708
    %v710 = vpop.f32.mrb[0].mxu0
    %711 = vdwg.mxu0
    %v712 = vmax.f32 %v704, 0.0
    %v713 = vmax.f32 %v709, 0.0
    %v714 = vld [vmem:[#allocation10 + $0x180] sm:$0xff]
    %v715 = vld [vmem:[#allocation10 + $0x188] sm:$0xff]
    %v716 = vld [vmem:[#allocation10 + $0x190] sm:$0xff]
    %v717 = vld [vmem:[#allocation10 + $0x198] sm:$0xff]
    %v718 = vld [vmem:[#allocation10 + $0x1a0] sm:$0xff]
    %v719 = vld [vmem:[#allocation10 + $0x1a8] sm:$0xff]
    %v720 = vld [vmem:[#allocation10 + $0x1b0] sm:$0xff]
    %v721 = vld [vmem:[#allocation10 + $0x1b8] sm:$0xff]
    %v722 = vld [vmem:[#allocation10 + $0x1c0] sm:$0xff]
    %v723 = vld [vmem:[#allocation10 + $0x1c8] sm:$0xff]
    %v724 = vld [vmem:[#allocation10 + $0x1d0] sm:$0xff]
    %v725 = vld [vmem:[#allocation10 + $0x1d8] sm:$0xff]
    %v726 = vld [vmem:[#allocation10 + $0x1e0] sm:$0xff]
    %v727 = vld [vmem:[#allocation10 + $0x1e8] sm:$0xff]
    %v728 = vld [vmem:[#allocation10 + $0x1f0] sm:$0xff]
    %v729 = vld [vmem:[#allocation10 + $0x1f8] sm:$0xff]
    %v730 = vld [vmem:[%s5 + $0x3] sm:$0x1]
    %v731 = vlaneseq
    %v732 = vshrl.u32 %v731, 7
    %v733 = vsub.s32 0, %v732
    %v734 = vrot.slane %v730, %v733
    %735 = vmatprep.subr.mxu0 0.0
    %736 = vmatpush1.msra.mxu0 %v714
    %737 = vmatprep.subr.mxu0 0.0
    %738 = vmatpush1.msra.mxu0 %v715
    %739 = vmatprep.subr.mxu0 0.0
    %740 = vmatpush1.msra.mxu0 %v716
    %741 = vmatprep.subr.mxu0 0.0
    %742 = vmatpush1.msra.mxu0 %v717
    %743 = vmatprep.subr.mxu0 0.0
    %744 = vmatpush1.msra.mxu0 %v718
    %745 = vmatprep.subr.mxu0 0.0
    %746 = vmatpush1.msra.mxu0 %v719
    %747 = vmatprep.subr.mxu0 0.0
    %748 = vmatpush1.msra.mxu0 %v720
    %749 = vmatprep.subr.mxu0 0.0
    %750 = vmatpush1.msra.mxu0 %v721
    %751 = vmatprep.subr.mxu0 0.0
    %752 = vmatpush1.msra.mxu0 %v722
    %753 = vmatprep.subr.mxu0 0.0
    %754 = vmatpush1.msra.mxu0 %v723
    %755 = vmatprep.subr.mxu0 0.0
    %756 = vmatpush1.msra.mxu0 %v724
    %757 = vmatprep.subr.mxu0 0.0
    %758 = vmatpush1.msra.mxu0 %v725
    %759 = vmatprep.subr.mxu0 0.0
    %760 = vmatpush1.msra.mxu0 %v726
    %761 = vmatprep.subr.mxu0 0.0
    %762 = vmatpush1.msra.mxu0 %v727
    %763 = vmatprep.subr.mxu0 0.0
    %764 = vmatpush1.msra.mxu0 %v728
    %765 = vmatprep.subr.mxu0 0.0
    %766 = vmatpush1.msra.mxu0 %v729
    %767 = vmatprep.subr.mxu0 0.0
    %768 = vmatpush1.msra.mxu0 0.0
    %769 = vmatprep.subr.mxu0 0.0
    %770 = vmatpush1.msra.mxu0 0.0
    %771 = vmatprep.subr.mxu0 0.0
    %772 = vmatpush1.msra.mxu0 0.0
    %773 = vmatprep.subr.mxu0 0.0
    %774 = vmatpush1.msra.mxu0 0.0
    %775 = vmatprep.subr.mxu0 0.0
    %776 = vmatpush1.msra.mxu0 0.0
    %777 = vmatprep.subr.mxu0 0.0
    %778 = vmatpush1.msra.mxu0 0.0
    %779 = vmatprep.subr.mxu0 0.0
    %780 = vmatpush1.msra.mxu0 0.0
    %781 = vmatprep.subr.mxu0 0.0
    %782 = vmatpush1.msra.mxu0 0.0
    %783 = vmatprep.subr.mxu0 0.0
    %784 = vmatpush1.msra.mxu0 0.0
    %785 = vmatprep.subr.mxu0 0.0
    %786 = vmatpush1.msra.mxu0 0.0
    %787 = vmatprep.subr.mxu0 0.0
    %788 = vmatpush1.msra.mxu0 0.0
    %789 = vmatprep.subr.mxu0 0.0
    %790 = vmatpush1.msra.mxu0 0.0
    %791 = vmatprep.subr.mxu0 0.0
    %792 = vmatpush1.msra.mxu0 0.0
    %793 = vmatprep.subr.mxu0 0.0
    %794 = vmatpush1.msra.mxu0 0.0
    %795 = vmatprep.subr.mxu0 0.0
    %796 = vmatpush1.msra.mxu0 0.0
    %797 = vmatprep.subr.mxu0 0.0
    %798 = vmatpush1.msra.mxu0 0.0
    %799 = vmatprep.mubr.f32.mxu0 0.0
    %800 = vmatmul.mubr.f32.gmra.mrb[0].mxu0 %v712
    %v801 = vpop.f32.mrb[0].mxu0
    %v802 = vadd.f32 %v734, %v801
    %v803 = vpop.f32.mrb[0].mxu0
    %804 = vmatprep.mubr.f32.mxu0 0.0
    %805 = vmatmul.mubr.f32.gmra.mrb[0].mxu0 %v713
    %v806 = vpop.f32.mrb[0].mxu0
    %v807 = vadd.f32 %v734, %v806
    %v808 = vpop.f32.mrb[0].mxu0
    %809 = vdwg.mxu0
    %v810 = vmax.f32 %v802, 0.0
    %v811 = vmax.f32 %v807, 0.0
    %812 = vmatprep.subr.mxu0 0.0
    %813 = vmatpush1.msra.mxu0 %v810
    %814 = vmatprep.subr.mxu0 0.0
    %815 = vmatpush1.msra.mxu0 %v811
    %816 = vmatprep.subr.mxu0 0.0
    %817 = vmatpush1.msra.mxu0 0.0
    %818 = vmatprep.subr.mxu0 0.0
    %819 = vmatpush1.msra.mxu0 0.0
    %820 = vmatprep.subr.mxu0 0.0
    %821 = vmatpush1.msra.mxu0 0.0
    %822 = vmatprep.subr.mxu0 0.0
    %823 = vmatpush1.msra.mxu0 0.0
    %824 = vmatprep.subr.mxu0 0.0
    %825 = vmatpush1.msra.mxu0 0.0
    %826 = vmatprep.subr.mxu0 0.0
    %827 = vmatpush1.msra.mxu0 0.0
    %828 = vmatprep.subr.mxu0 0.0
    %829 = vmatpush1.msra.mxu0 0.0
    %830 = vmatprep.subr.mxu0 0.0
    %831 = vmatpush1.msra.mxu0 0.0
    %832 = vmatprep.subr.mxu0 0.0
    %833 = vmatpush1.msra.mxu0 0.0
    %834 = vmatprep.subr.mxu0 0.0
    %835 = vmatpush1.msra.mxu0 0.0
    %836 = vmatprep.subr.mxu0 0.0
    %837 = vmatpush1.msra.mxu0 0.0
    %838 = vmatprep.subr.mxu0 0.0
    %839 = vmatpush1.msra.mxu0 0.0
    %840 = vmatprep.subr.mxu0 0.0
    %841 = vmatpush1.msra.mxu0 0.0
    %842 = vmatprep.subr.mxu0 0.0
    %843 = vmatpush1.msra.mxu0 0.0
    %844 = vmatprep.subr.mxu0 0.0
    %845 = vmatpush1.msra.mxu0 0.0
    %846 = vmatprep.subr.mxu0 0.0
    %847 = vmatpush1.msra.mxu0 0.0
    %848 = vmatprep.subr.mxu0 0.0
    %849 = vmatpush1.msra.mxu0 0.0
    %850 = vmatprep.subr.mxu0 0.0
    %851 = vmatpush1.msra.mxu0 0.0
    %852 = vmatprep.subr.mxu0 0.0
    %853 = vmatpush1.msra.mxu0 0.0
    %854 = vmatprep.subr.mxu0 0.0
    %855 = vmatpush1.msra.mxu0 0.0
    %856 = vmatprep.subr.mxu0 0.0
    %857 = vmatpush1.msra.mxu0 0.0
    %858 = vmatprep.subr.mxu0 0.0
    %859 = vmatpush1.msra.mxu0 0.0
    %860 = vmatprep.subr.mxu0 0.0
    %861 = vmatpush1.msra.mxu0 0.0
    %862 = vmatprep.subr.mxu0 0.0
    %863 = vmatpush1.msra.mxu0 0.0
    %864 = vmatprep.subr.mxu0 0.0
    %865 = vmatpush1.msra.mxu0 0.0
    %866 = vmatprep.subr.mxu0 0.0
    %867 = vmatpush1.msra.mxu0 0.0
    %868 = vmatprep.subr.mxu0 0.0
    %869 = vmatpush1.msra.mxu0 0.0
    %870 = vmatprep.subr.mxu0 0.0
    %871 = vmatpush1.msra.mxu0 0.0
    %872 = vmatprep.subr.mxu0 0.0
    %873 = vmatpush1.msra.mxu0 0.0
    %874 = vmatprep.subr.mxu0 0.0
    %875 = vmatpush1.msra.mxu0 0.0
    %876 = vmatprep.mubr.f32.mxu0 0.0
    %877 = vmatmul.mubr.f32.gmra.mrb[0].mxu0 %v114
    %v878 = vpop.f32.mrb[0].mxu0
    %v879 = vadd.f32 0.0, %v878
    %v880 = vpop.f32.mrb[0].mxu0
    %881 = vdwg.mxu0
    %v882 = vld [vmem:[#allocation12] sm:$0xff]
    %v883 = vld [vmem:[#allocation12 + $0x8] sm:$0xff]
    %v884 = vld [vmem:[#allocation12 + $0x10] sm:$0xff]
    %v885 = vld [vmem:[#allocation12 + $0x18] sm:$0xff]
    %v886 = vld [vmem:[#allocation12 + $0x20] sm:$0xff]
    %v887 = vld [vmem:[#allocation12 + $0x28] sm:$0xff]
    %v888 = vld [vmem:[#allocation12 + $0x30] sm:$0xff]
    %v889 = vld [vmem:[#allocation12 + $0x38] sm:$0xff]
    %v890 = vld [vmem:[#allocation12 + $0x40] sm:$0xff]
    %v891 = vld [vmem:[#allocation12 + $0x48] sm:$0xff]
    %v892 = vld [vmem:[#allocation12 + $0x50] sm:$0xff]
    %v893 = vld [vmem:[#allocation12 + $0x58] sm:$0xff]
    %v894 = vld [vmem:[#allocation12 + $0x60] sm:$0xff]
    %v895 = vld [vmem:[#allocation12 + $0x68] sm:$0xff]
    %v896 = vld [vmem:[#allocation12 + $0x70] sm:$0xff]
    %v897 = vld [vmem:[#allocation12 + $0x78] sm:$0xff]
    %v898 = vld [vmem:[#allocation12 + $0x80] sm:$0xff]
    %v899 = vld [vmem:[#allocation12 + $0x88] sm:$0xff]
    %v900 = vld [vmem:[#allocation12 + $0x90] sm:$0xff]
    %v901 = vld [vmem:[#allocation12 + $0x98] sm:$0xff]
    %v902 = vld [vmem:[#allocation12 + $0xa0] sm:$0xff]
    %v903 = vld [vmem:[#allocation12 + $0xa8] sm:$0xff]
    %v904 = vld [vmem:[#allocation12 + $0xb0] sm:$0xff]
    %v905 = vld [vmem:[#allocation12 + $0xb8] sm:$0xff]
    %v906 = vld [vmem:[#allocation12 + $0xc0] sm:$0xff]
    %v907 = vld [vmem:[#allocation12 + $0xc8] sm:$0xff]
    %v908 = vld [vmem:[#allocation12 + $0xd0] sm:$0xff]
    %v909 = vld [vmem:[#allocation12 + $0xd8] sm:$0xff]
    %v910 = vld [vmem:[#allocation12 + $0xe0] sm:$0xff]
    %v911 = vld [vmem:[#allocation12 + $0xe8] sm:$0xff]
    %v912 = vld [vmem:[#allocation12 + $0xf0] sm:$0xff]
    %v913 = vld [vmem:[#allocation12 + $0xf8] sm:$0xff]
    %v914 = vld [vmem:[#allocation12 + $0x100] sm:$0xff]
    %v915 = vld [vmem:[#allocation12 + $0x108] sm:$0xff]
    %v916 = vld [vmem:[#allocation12 + $0x110] sm:$0xff]
    %v917 = vld [vmem:[#allocation12 + $0x118] sm:$0xff]
    %v918 = vld [vmem:[#allocation12 + $0x120] sm:$0xff]
    %v919 = vld [vmem:[#allocation12 + $0x128] sm:$0xff]
    %v920 = vld [vmem:[#allocation12 + $0x130] sm:$0xff]
    %v921 = vld [vmem:[#allocation12 + $0x138] sm:$0xff]
    %v922 = vld [vmem:[#allocation12 + $0x140] sm:$0xff]
    %v923 = vld [vmem:[#allocation12 + $0x148] sm:$0xff]
    %v924 = vld [vmem:[#allocation12 + $0x150] sm:$0xff]
    %v925 = vld [vmem:[#allocation12 + $0x158] sm:$0xff]
    %v926 = vld [vmem:[#allocation12 + $0x160] sm:$0xff]
    %v927 = vld [vmem:[#allocation12 + $0x168] sm:$0xff]
    %v928 = vld [vmem:[#allocation12 + $0x170] sm:$0xff]
    %v929 = vld [vmem:[#allocation12 + $0x178] sm:$0xff]
    %v930 = vld [vmem:[%s7] sm:$0x1]
    %v932 = vlaneseq
    %v933 = vshrl.u32 %v932, 7
    %v934 = vsub.s32 0, %v933
    %v935 = vrot.slane %v930, %v934
    %937 = vmatprep.subr.mxu0 0.0
    %938 = vmatpush1.msra.mxu0 %v882
    %939 = vmatprep.subr.mxu0 0.0
    %940 = vmatpush1.msra.mxu0 %v883
    %941 = vmatprep.subr.mxu0 0.0
    %942 = vmatpush1.msra.mxu0 %v884
    %943 = vmatprep.subr.mxu0 0.0
    %944 = vmatpush1.msra.mxu0 %v885
    %945 = vmatprep.subr.mxu0 0.0
    %946 = vmatpush1.msra.mxu0 %v886
    %947 = vmatprep.subr.mxu0 0.0
    %948 = vmatpush1.msra.mxu0 %v887
    %949 = vmatprep.subr.mxu0 0.0
    %950 = vmatpush1.msra.mxu0 %v888
    %951 = vmatprep.subr.mxu0 0.0
    %952 = vmatpush1.msra.mxu0 %v889
    %953 = vmatprep.subr.mxu0 0.0
    %954 = vmatpush1.msra.mxu0 %v890
    %955 = vmatprep.subr.mxu0 0.0
    %956 = vmatpush1.msra.mxu0 %v891
    %957 = vmatprep.subr.mxu0 0.0
    %958 = vmatpush1.msra.mxu0 %v892
    %959 = vmatprep.subr.mxu0 0.0
    %960 = vmatpush1.msra.mxu0 %v893
    %961 = vmatprep.subr.mxu0 0.0
    %962 = vmatpush1.msra.mxu0 %v894
    %963 = vmatprep.subr.mxu0 0.0
    %964 = vmatpush1.msra.mxu0 %v895
    %965 = vmatprep.subr.mxu0 0.0
    %966 = vmatpush1.msra.mxu0 %v896
    %967 = vmatprep.subr.mxu0 0.0
    %968 = vmatpush1.msra.mxu0 %v897
    %969 = vmatprep.subr.mxu0 0.0
    %970 = vmatpush1.msra.mxu0 %v898
    %971 = vmatprep.subr.mxu0 0.0
    %972 = vmatpush1.msra.mxu0 %v899
    %973 = vmatprep.subr.mxu0 0.0
    %974 = vmatpush1.msra.mxu0 %v900
    %975 = vmatprep.subr.mxu0 0.0
    %976 = vmatpush1.msra.mxu0 %v901
    %977 = vmatprep.subr.mxu0 0.0
    %978 = vmatpush1.msra.mxu0 %v902
    %979 = vmatprep.subr.mxu0 0.0
    %980 = vmatpush1.msra.mxu0 %v903
    %981 = vmatprep.subr.mxu0 0.0
    %982 = vmatpush1.msra.mxu0 %v904
    %983 = vmatprep.subr.mxu0 0.0
    %984 = vmatpush1.msra.mxu0 %v905
    %985 = vmatprep.subr.mxu0 0.0
    %986 = vmatpush1.msra.mxu0 %v906
    %987 = vmatprep.subr.mxu0 0.0
    %988 = vmatpush1.msra.mxu0 %v907
    %989 = vmatprep.subr.mxu0 0.0
    %990 = vmatpush1.msra.mxu0 %v908
    %991 = vmatprep.subr.mxu0 0.0
    %992 = vmatpush1.msra.mxu0 %v909
    %993 = vmatprep.subr.mxu0 0.0
    %994 = vmatpush1.msra.mxu0 %v910
    %995 = vmatprep.subr.mxu0 0.0
    %996 = vmatpush1.msra.mxu0 %v911
    %997 = vmatprep.subr.mxu0 0.0
    %998 = vmatpush1.msra.mxu0 %v912
    %999 = vmatprep.subr.mxu0 0.0
    %1000 = vmatpush1.msra.mxu0 %v913
    %1001 = vmatprep.mubr.f32.mxu0 %v534
    %1002 = vmatmul.mubr.f32.gmra.mrb[0].mxu0 %v183
    %v1003 = vpop.f32.mrb[0].mxu0
    %v1004 = vadd.f32 %v935, %v1003
    %v1005 = vpop.f32.mrb[0].mxu0
    %1006 = vdwg.mxu0
    %1007 = vmatprep.subr.mxu0 0.0
    %1008 = vmatpush1.msra.mxu0 %v914
    %1009 = vmatprep.subr.mxu0 0.0
    %1010 = vmatpush1.msra.mxu0 %v915
    %1011 = vmatprep.subr.mxu0 0.0
    %1012 = vmatpush1.msra.mxu0 %v916
    %1013 = vmatprep.subr.mxu0 0.0
    %1014 = vmatpush1.msra.mxu0 %v917
    %1015 = vmatprep.subr.mxu0 0.0
    %1016 = vmatpush1.msra.mxu0 %v918
    %1017 = vmatprep.subr.mxu0 0.0
    %1018 = vmatpush1.msra.mxu0 %v919
    %1019 = vmatprep.subr.mxu0 0.0
    %1020 = vmatpush1.msra.mxu0 %v920
    %1021 = vmatprep.subr.mxu0 0.0
    %1022 = vmatpush1.msra.mxu0 %v921
    %1023 = vmatprep.subr.mxu0 0.0
    %1024 = vmatpush1.msra.mxu0 %v922
    %1025 = vmatprep.subr.mxu0 0.0
    %1026 = vmatpush1.msra.mxu0 %v923
    %1027 = vmatprep.subr.mxu0 0.0
    %1028 = vmatpush1.msra.mxu0 %v924
    %1029 = vmatprep.subr.mxu0 0.0
    %1030 = vmatpush1.msra.mxu0 %v925
    %1031 = vmatprep.subr.mxu0 0.0
    %1032 = vmatpush1.msra.mxu0 %v926
    %1033 = vmatprep.subr.mxu0 0.0
    %1034 = vmatpush1.msra.mxu0 %v927
    %1035 = vmatprep.subr.mxu0 0.0
    %1036 = vmatpush1.msra.mxu0 %v928
    %1037 = vmatprep.subr.mxu0 0.0
    %1038 = vmatpush1.msra.mxu0 %v929
    %1039 = vmatprep.subr.mxu0 0.0
    %1040 = vmatpush1.msra.mxu0 0.0
    %1041 = vmatprep.subr.mxu0 0.0
    %1042 = vmatpush1.msra.mxu0 0.0
    %1043 = vmatprep.subr.mxu0 0.0
    %1044 = vmatpush1.msra.mxu0 0.0
    %1045 = vmatprep.subr.mxu0 0.0
    %1046 = vmatpush1.msra.mxu0 0.0
    %1047 = vmatprep.subr.mxu0 0.0
    %1048 = vmatpush1.msra.mxu0 0.0
    %1049 = vmatprep.subr.mxu0 0.0
    %1050 = vmatpush1.msra.mxu0 0.0
    %1051 = vmatprep.subr.mxu0 0.0
    %1052 = vmatpush1.msra.mxu0 0.0
    %1053 = vmatprep.subr.mxu0 0.0
    %1054 = vmatpush1.msra.mxu0 0.0
    %1055 = vmatprep.subr.mxu0 0.0
    %1056 = vmatpush1.msra.mxu0 0.0
    %1057 = vmatprep.subr.mxu0 0.0
    %1058 = vmatpush1.msra.mxu0 0.0
    %1059 = vmatprep.subr.mxu0 0.0
    %1060 = vmatpush1.msra.mxu0 0.0
    %1061 = vmatprep.subr.mxu0 0.0
    %1062 = vmatpush1.msra.mxu0 0.0
    %1063 = vmatprep.subr.mxu0 0.0
    %1064 = vmatpush1.msra.mxu0 0.0
    %1065 = vmatprep.subr.mxu0 0.0
    %1066 = vmatpush1.msra.mxu0 0.0
    %1067 = vmatprep.subr.mxu0 0.0
    %1068 = vmatpush1.msra.mxu0 0.0
    %1069 = vmatprep.subr.mxu0 0.0
    %1070 = vmatpush1.msra.mxu0 0.0
    %1071 = vmatprep.mubr.f32.mxu0 0.0
    %1072 = vmatmul.mubr.f32.gmra.mrb[0].mxu0 %v879
    %v1073 = vpop.f32.mrb[0].mxu0
    %v1074 = vadd.f32 %v1004, %v1073
    %v1075 = vpop.f32.mrb[0].mxu0
    %1076 = vdwg.mxu0
    %1077 = vst [vmem:[#allocation13] sm:$0xff] %v1074
    // Predicated region
    $region58: #{tpu_custom_call.1} parent=1 // pred_check
      _
    $region59: #{tpu_custom_call.1} parent=1 // pred_check_branch
      %1079 = sbr.rel (0) target = $region61
    $region60: #{tpu_custom_call.1} parent=1 // pred_region
      %s1081 = ssub.s32 128, 128
      %1082 = vsyncadd [#allocation4], %s1081
      %s1084 = sshll.u32 [#allocation13], 4
      %s1085 = int_to_ptr.vmem [resolvable:$true] %s1084
      %1087 = dma.vmem_to_hbm [thread:$0]  %s1085, 128, %s8, [#allocation4]
    $region61: #{tpu_custom_call.1} parent=1 // pred_fallthru
      _
    // Predicated region
    $region62: #{tpu_custom_call.1} parent=1 // pred_check
      _
    $region63: #{tpu_custom_call.1} parent=1 // pred_check_branch
      %1089 = sbr.rel (0) target = $region65
    $region64: #{tpu_custom_call.1} parent=1 // pred_region
      %1090 = dma.done [#allocation4], 128
    $region65: #{tpu_custom_call.1} parent=1 // pred_fallthru
      _
    %1091 = vsyncpa [#allocation3], 1
    %1092 = vsyncpa [#allocation8], 1
    %1093 = vsyncpa [#allocation11], 1
    %1094 = vsyncpa [#allocation4], 1
    %1095 = vsyncpa [#allocation5], 1

</llo_original>
